<compile_context>
chip_gen: v5e
topology: v5e:2x2
jax: 0.10.0
libtpu: 0.0.40
codegen_flags: <defaults>
</compile_context>

<pallas_src>
import functools

import jax
import jax.numpy as jnp
from jax.experimental import pallas as pl
from jax.experimental.pallas import tpu as pltpu


def mha_kernel(x_ref, wqkv_ref, wp_ref, bp_ref, o_ref, *, num_heads):
    # x_ref:    (Bb, T, C)      input block (native dtype)
    # wqkv_ref: (H, C, 3*hs)    per-head fused [Wq^T | Wk^T | Wv^T], head-major leading dim
    # wp_ref:   (H, hs, C)      output projection, rows grouped by head
    # bp_ref:   (1, C)          output projection bias
    # o_ref:    (Bb, T, C)      output block
    Bb, T, C = x_ref.shape
    H = num_heads
    hs = C // H
    scale = C ** (-0.5)  # NOTE: module scales by n_embd (C), not head_size — kept on purpose.

    dt = x_ref.dtype
    x2d = x_ref[...].reshape(Bb * T, C)                     # (M, C), M = Bb*T

    # --- head-batched QKV projection (heads on the leading batch axis) ---------
    xh = jnp.broadcast_to(x2d, (H, Bb * T, C))              # tiny; hoisted, single use
    qkv = jnp.einsum('hmc,hce->hme', xh, wqkv_ref[...],
                     preferred_element_type=jnp.float32)    # (H, M, 3*hs) f32 acc
    qkv = qkv.astype(dt)

    # Static minor slices (q | k | v within a head), then fold batch into the
    # leading axis: (H, Bb*T, hs) -> (H*Bb, T, hs).
    q = qkv[:, :, 0 * hs:1 * hs].reshape(H * Bb, T, hs)
    k = qkv[:, :, 1 * hs:2 * hs].reshape(H * Bb, T, hs)
    v = qkv[:, :, 2 * hs:3 * hs].reshape(H * Bb, T, hs)

    # --- attention: one batched einsum over all heads --------------------------
    s = jnp.einsum('bqd,bkd->bqk', q, k,
                   preferred_element_type=jnp.float32) * scale   # (H*Bb, T, T) f32
    row = jax.lax.broadcasted_iota(jnp.int32, (T, T), 0)
    col = jax.lax.broadcasted_iota(jnp.int32, (T, T), 1)
    causal = (col <= row)[None]                                   # (1, T, T)
    s = jnp.where(causal, s, -1e30)          # finite mask value: NaN-safe
    s = s - jnp.max(s, axis=-1, keepdims=True)
    p = jnp.exp(s)                                                # f32 softmax
    p = p / jnp.sum(p, axis=-1, keepdims=True)                    # exact divide (tight tolerance)
    # TODO(synk): attention-weight dropout skipped (module in eval mode).

    ctx = jnp.einsum('bqk,bkd->bqd', p.astype(dt), v,
                     preferred_element_type=jnp.float32)          # (H*Bb, T, hs) f32

    # --- output projection with the head-concat folded in ----------------------
    ctx = ctx.astype(dt).reshape(H, Bb * T, hs)                   # (H, M, hs)
    out = jnp.einsum('hmd,hdc->hmc', ctx, wp_ref[...],
                     preferred_element_type=jnp.float32)          # (H, M, C) f32
    out = jnp.sum(out, axis=0) + bp_ref[...].astype(jnp.float32)  # (M, C)
    # TODO(synk): output dropout skipped (module in eval mode).
    o_ref[...] = out.reshape(Bb, T, C).astype(o_ref.dtype)


def multi_head_attention(x, wq, wk, wv, wp, bp):
    B, T, C = x.shape
    H, hs, _ = wq.shape
    assert H * hs == C
    dtype = x.dtype

    # --- host-side weight prep (free): head-major layouts, pre-transposed ------
    w_qkv_h = jnp.concatenate(
        [jnp.transpose(wq, (0, 2, 1)),       # (H, C, hs)
         jnp.transpose(wk, (0, 2, 1)),
         jnp.transpose(wv, (0, 2, 1))],
        axis=-1).astype(dtype)               # (H, C, 3*hs)
    w_proj_h = wp.T.reshape(H, hs, C).astype(dtype)   # row group h == attn features of head h
    bp2 = bp.reshape(1, C).astype(dtype)

    # --- size block_b from a VMEM budget (not a fixed cap / divisor search) ----
    itemsize = jnp.dtype(dtype).itemsize

    def vmem_bytes(bb):
        m = bb * T
        blocks = 2 * (bb * T * C * itemsize) * 2                    # dbl-buffered in + out blocks
        weights = 2 * (H * C * 3 * hs + H * hs * C + C) * itemsize  # dbl-buffered weights
        interm = (H * m * C * 4          # broadcast x
                  + 2 * H * m * 3 * hs * 4   # qkv (f32 + narrowed copy)
                  + 3 * H * bb * T * hs * 4  # q, k, v
                  + 2 * H * bb * T * T * 4   # scores + probs (f32)
                  + H * m * hs * 4           # per-head context
                  + H * m * C * 4 + m * C * 4)  # per-head proj + summed output
        return blocks + weights + interm

    budget = 24 << 20                    # conservative: fits v5e/v6e scoped VMEM and v7x (64 MiB total)
    max_bb = max(1, B // 2) if B >= 2 else 1   # keep >= 2 grid steps so both v7x TCs get work
    block_b = 1
    for bb in range(max_bb, 0, -1):
        if vmem_bytes(bb) <= budget:
            block_b = bb
            break

    grid_b = pl.cdiv(B, block_b)
    b_pad = grid_b * block_b
    x_in = x if b_pad == B else jnp.pad(x, ((0, b_pad - B), (0, 0), (0, 0)))

    vmem_limit = min(max(int(vmem_bytes(block_b) * 1.5), 16 << 20), 48 << 20)

    kernel = functools.partial(mha_kernel, num_heads=H)

    out = pl.pallas_call(
        kernel,
        out_shape=jax.ShapeDtypeStruct((b_pad, T, C), dtype),
        grid_spec=pltpu.PrefetchScalarGridSpec(
            num_scalar_prefetch=0,
            grid=(grid_b,),
            in_specs=[
                pl.BlockSpec((block_b, T, C), lambda b: (b, 0, 0)),
                pl.BlockSpec((H, C, 3 * hs), lambda b: (0, 0, 0)),
                pl.BlockSpec((H, hs, C), lambda b: (0, 0, 0)),
                pl.BlockSpec((1, C), lambda b: (0, 0)),
            ],
            out_specs=pl.BlockSpec((block_b, T, C), lambda b: (b, 0, 0)),
        ),
        compiler_params=pltpu.CompilerParams(
            dimension_semantics=("parallel",),
            vmem_limit_bytes=vmem_limit),
    )(x_in, w_qkv_h, w_proj_h, bp2)

    return out[:B]


def reference(x, wq, wk, wv, wp, bp):
    B, T, C = x.shape
    H, hs, _ = wq.shape
    scale = C ** (-0.5)
    causal = jnp.tril(jnp.ones((T, T), dtype=bool))
    heads = []
    for h in range(H):
        q = x @ wq[h].T
        k = x @ wk[h].T
        v = x @ wv[h].T
        wei = (q @ jnp.swapaxes(k, -2, -1)) * scale
        wei = jnp.where(causal, wei, -jnp.inf)
        wei = jax.nn.softmax(wei, axis=-1)
        heads.append(wei @ v)
    out = jnp.concatenate(heads, axis=-1)
    return out @ wp.T + bp


if __name__ == "__main__":
    # config: n_embd=32, n_heads=4 (head_size=8), block_size=8, dropout=0.0 (eval)
    B, T, C = 2, 8, 32
    H = 4
    hs = C // H

    key = jax.random.PRNGKey(0)
    kx, kq, kk, kv, kp, kb = jax.random.split(key, 6)

    x = jax.random.normal(kx, (B, T, C), dtype=jnp.float32)
    wq = jax.random.normal(kq, (H, hs, C), dtype=jnp.float32) * 0.1
    wk = jax.random.normal(kk, (H, hs, C), dtype=jnp.float32) * 0.1
    wv = jax.random.normal(kv, (H, hs, C), dtype=jnp.float32) * 0.1
    wp = jax.random.normal(kp, (C, C), dtype=jnp.float32) * 0.1
    bp = jax.random.normal(kb, (C,), dtype=jnp.float32) * 0.1

    out = multi_head_attention(x, wq, wk, wv, wp, bp)
    out = jax.block_until_ready(out)

    ref = reference(x, wq, wk, wv, wp, bp)
    assert out.shape == (B, T, C)
    assert jnp.allclose(out, ref, atol=1e-3, rtol=1e-3), "mismatch vs reference"

    print("KERNEL_OK")
</pallas_src>

<mosaic_0001>
module attributes {stable_mosaic.version = 11 : i64} {
  func.func @mha_kernel(%arg0: i32, %arg1: memref<1x8x32xf32, #tpu.memory_space<vmem>>, %arg2: memref<4x32x24xf32, #tpu.memory_space<vmem>>, %arg3: memref<4x8x32xf32, #tpu.memory_space<vmem>>, %arg4: memref<1x32xf32, #tpu.memory_space<vmem>>, %arg5: memref<1x8x32xf32, #tpu.memory_space<vmem>>) attributes {dimension_semantics = [#tpu.dimension_semantics<parallel>], iteration_bounds = array<i64: 2>, scalar_prefetch = 0 : i64, scratch_operands = 0 : i64, tpu.core_type = #tpu.core_type<tc>, window_params = [{transform_indices = @transform_0, window_bounds = array<i64: 1, 8, 32>}, {pipeline_mode = #tpu.pipeline_mode<synchronous>, transform_indices = @transform_1, window_bounds = array<i64: 4, 32, 24>}, {pipeline_mode = #tpu.pipeline_mode<synchronous>, transform_indices = @transform_2, window_bounds = array<i64: 4, 8, 32>}, {pipeline_mode = #tpu.pipeline_mode<synchronous>, transform_indices = @transform_3, window_bounds = array<i64: 1, 32>}, {transform_indices = @transform_4, window_bounds = array<i64: 1, 8, 32>}]} {
    %c0 = arith.constant 0 : index
    %c0_0 = arith.constant 0 : index
    %c0_1 = arith.constant 0 : index
    %0 = vector.load %arg1[%c0, %c0_0, %c0_1] : memref<1x8x32xf32, #tpu.memory_space<vmem>>, vector<1x8x32xf32>
    %1 = vector.shape_cast %0 : vector<1x8x32xf32> to vector<8x32xf32>
    %2 = vector.shape_cast %1 : vector<8x32xf32> to vector<1x8x32xf32>
    %3 = vector.broadcast %2 : vector<1x8x32xf32> to vector<4x8x32xf32>
    %c0_2 = arith.constant 0 : index
    %c0_3 = arith.constant 0 : index
    %c0_4 = arith.constant 0 : index
    %4 = vector.load %arg2[%c0_2, %c0_3, %c0_4] : memref<4x32x24xf32, #tpu.memory_space<vmem>>, vector<4x32x24xf32>
    "tpu.trace_start"() <{level = 10 : i32, message = "hmc,hce->hme"}> : () -> ()
    %cst = arith.constant dense<0.000000e+00> : vector<4x8x24xf32>
    %5 = tpu.matmul %3, %4, %cst {dimension_numbers = #tpu.dot_dimension_numbers<[2], [1], [1], [2], [0, 0, 0, 1, 1, 2], [0], [0]>} : vector<4x8x32xf32>, vector<4x32x24xf32>, vector<4x8x24xf32> -> vector<4x8x24xf32>
    "tpu.trace_stop"() : () -> ()
    %6 = vector.extract_strided_slice %5 {offsets = [0, 0, 0], sizes = [4, 8, 8], strides = [1, 1, 1]} : vector<4x8x24xf32> to vector<4x8x8xf32>
    %7 = vector.extract_strided_slice %5 {offsets = [0, 0, 8], sizes = [4, 8, 8], strides = [1, 1, 1]} : vector<4x8x24xf32> to vector<4x8x8xf32>
    %8 = vector.extract_strided_slice %5 {offsets = [0, 0, 16], sizes = [4, 8, 8], strides = [1, 1, 1]} : vector<4x8x24xf32> to vector<4x8x8xf32>
    "tpu.trace_start"() <{level = 10 : i32, message = "bqd,bkd->bqk"}> : () -> ()
    %cst_5 = arith.constant dense<0.000000e+00> : vector<4x8x8xf32>
    %9 = tpu.matmul %6, %7, %cst_5 {dimension_numbers = #tpu.dot_dimension_numbers<[2], [2], [1], [1], [0, 0, 0, 1, 1, 1], [0], [0]>} : vector<4x8x8xf32>, vector<4x8x8xf32>, vector<4x8x8xf32> -> vector<4x8x8xf32>
    "tpu.trace_stop"() : () -> ()
    %cst_6 = arith.constant 0.176776692 : f32
    %10 = vector.broadcast %cst_6 : f32 to vector<4x8x8xf32>
    %11 = arith.mulf %9, %10 : vector<4x8x8xf32>
    %12 = tpu.iota {dimensions = array<i32: 0>} : vector<8x8xi32>
    %13 = tpu.iota {dimensions = array<i32: 1>} : vector<8x8xi32>
    %14 = arith.cmpi sle, %13, %12 : vector<8x8xi32>
    %15 = vector.shape_cast %14 : vector<8x8xi1> to vector<1x8x8xi1>
    %cst_7 = arith.constant -1.000000e+30 : f32
    %16 = vector.shape_cast %15 : vector<1x8x8xi1> to vector<1x8x8xi1>
    %17 = vector.broadcast %16 : vector<1x8x8xi1> to vector<4x8x8xi1>
    %18 = vector.broadcast %cst_7 : f32 to vector<4x8x8xf32>
    %19 = arith.select %17, %11, %18 : vector<4x8x8xi1>, vector<4x8x8xf32>
    %cst_8 = arith.constant dense<0xFF800000> : vector<4x8xf32>
    %20 = vector.multi_reduction <maximumf>, %19, %cst_8 [2] : vector<4x8x8xf32> to vector<4x8xf32>
    %21 = vector.shape_cast %20 : vector<4x8xf32> to vector<4x8x1xf32>
    %22 = vector.broadcast %21 : vector<4x8x1xf32> to vector<4x8x8xf32>
    %23 = arith.subf %19, %22 : vector<4x8x8xf32>
    %24 = math.exp %23 : vector<4x8x8xf32>
    %cst_9 = arith.constant dense<0.000000e+00> : vector<4x8xf32>
    %25 = vector.multi_reduction <add>, %24, %cst_9 [2] : vector<4x8x8xf32> to vector<4x8xf32>
    %26 = vector.shape_cast %25 : vector<4x8xf32> to vector<4x8x1xf32>
    %27 = vector.broadcast %26 : vector<4x8x1xf32> to vector<4x8x8xf32>
    %28 = arith.divf %24, %27 : vector<4x8x8xf32>
    "tpu.trace_start"() <{level = 10 : i32, message = "bqk,bkd->bqd"}> : () -> ()
    %cst_10 = arith.constant dense<0.000000e+00> : vector<4x8x8xf32>
    %29 = tpu.matmul %28, %8, %cst_10 {dimension_numbers = #tpu.dot_dimension_numbers<[2], [1], [1], [2], [0, 0, 0, 1, 1, 2], [0], [0]>} : vector<4x8x8xf32>, vector<4x8x8xf32>, vector<4x8x8xf32> -> vector<4x8x8xf32>
    "tpu.trace_stop"() : () -> ()
    %c0_11 = arith.constant 0 : index
    %c0_12 = arith.constant 0 : index
    %c0_13 = arith.constant 0 : index
    %30 = vector.load %arg3[%c0_11, %c0_12, %c0_13] : memref<4x8x32xf32, #tpu.memory_space<vmem>>, vector<4x8x32xf32>
    "tpu.trace_start"() <{level = 10 : i32, message = "hmd,hdc->hmc"}> : () -> ()
    %cst_14 = arith.constant dense<0.000000e+00> : vector<4x8x32xf32>
    %31 = tpu.matmul %29, %30, %cst_14 {dimension_numbers = #tpu.dot_dimension_numbers<[2], [1], [1], [2], [0, 0, 0, 1, 1, 2], [0], [0]>} : vector<4x8x8xf32>, vector<4x8x32xf32>, vector<4x8x32xf32> -> vector<4x8x32xf32>
    "tpu.trace_stop"() : () -> ()
    %cst_15 = arith.constant dense<0.000000e+00> : vector<8x32xf32>
    %32 = vector.multi_reduction <add>, %31, %cst_15 [0] : vector<4x8x32xf32> to vector<8x32xf32>
    %c0_16 = arith.constant 0 : index
    %c0_17 = arith.constant 0 : index
    %33 = vector.load %arg4[%c0_16, %c0_17] : memref<1x32xf32, #tpu.memory_space<vmem>>, vector<1x32xf32>
    %34 = vector.broadcast %33 : vector<1x32xf32> to vector<8x32xf32>
    %35 = arith.addf %32, %34 : vector<8x32xf32>
    %36 = vector.shape_cast %35 : vector<8x32xf32> to vector<1x8x32xf32>
    %c0_18 = arith.constant 0 : index
    %c0_19 = arith.constant 0 : index
    %c0_20 = arith.constant 0 : index
    %37 = vector.load %arg5[%c0_18, %c0_19, %c0_20] : memref<1x8x32xf32, #tpu.memory_space<vmem>>, vector<1x8x32xf32>
    tpu.vector_store %arg5[%c0_18, %c0_19, %c0_20], %36 {strides = array<i32>} : memref<1x8x32xf32, #tpu.memory_space<vmem>>, vector<1x8x32xf32>,
    return
  }
  func.func @transform_0(%arg0: i32) -> (i32, i32, i32) {
    %c0_i32 = arith.constant 0 : i32
    %c0_i32_0 = arith.constant 0 : i32
    %c0_i32_1 = arith.constant 0 : i32
    return %arg0, %c0_i32, %c0_i32_0 : i32, i32, i32
  }
  func.func @transform_1(%arg0: i32) -> (i32, i32, i32) {
    %c0_i32 = arith.constant 0 : i32
    %c0_i32_0 = arith.constant 0 : i32
    %c0_i32_1 = arith.constant 0 : i32
    %c0_i32_2 = arith.constant 0 : i32
    return %c0_i32, %c0_i32_0, %c0_i32_1 : i32, i32, i32
  }
  func.func @transform_2(%arg0: i32) -> (i32, i32, i32) {
    %c0_i32 = arith.constant 0 : i32
    %c0_i32_0 = arith.constant 0 : i32
    %c0_i32_1 = arith.constant 0 : i32
    %c0_i32_2 = arith.constant 0 : i32
    return %c0_i32, %c0_i32_0, %c0_i32_1 : i32, i32, i32
  }
  func.func @transform_3(%arg0: i32) -> (i32, i32) {
    %c0_i32 = arith.constant 0 : i32
    %c0_i32_0 = arith.constant 0 : i32
    %c0_i32_1 = arith.constant 0 : i32
    return %c0_i32, %c0_i32_0 : i32, i32
  }
  func.func @transform_4(%arg0: i32) -> (i32, i32, i32) {
    %c0_i32 = arith.constant 0 : i32
    %c0_i32_0 = arith.constant 0 : i32
    %c0_i32_1 = arith.constant 0 : i32
    return %arg0, %c0_i32, %c0_i32_0 : i32, i32, i32
  }
}

</mosaic_0001>

<llo_original>
// kernel: tpu_custom_call.1
$region0: #{tpu_custom_call.1}
  #allocation0 [shape = 'u32[]', space=smem, size = 0x4, offset = 0x4, fixed_abs, tag = 'smem constant byte address 0x4 - core index']
  #allocation1 [shape = 'u32[72,128]{1,0:T(1,128)}', space=vmem, size = 0x9000, scoped, tag = 'internal scratch']
  %s0 = inlined_call_operand.vmem [shape: f32[2,8,32], index: 0, kind: input, shape index: {}]
  %s1 = inlined_call_operand.vmem [shape: f32[4,32,24], index: 1, kind: input, shape index: {}]
  %s2 = inlined_call_operand.vmem [shape: f32[4,8,32], index: 2, kind: input, shape index: {}]
  %s3 = inlined_call_operand.vmem [shape: f32[1,32], index: 3, kind: input, shape index: {}]
  %s4 = inlined_call_operand.hbm [shape: f32[2,8,32], index: 4, kind: output, shape index: {}]
  %s5 = sld [smem:[#allocation0]]
  $region49: #{tpu_custom_call.1} parent=0
    _
  %s7 = ssub.s32 1, %s5
  %s8 = scalar_select 0, %s7, %s5
  $region1: #{tpu_custom_call.1} parent=0
    #allocation2 [shape = 'u8[8192]{0}', space=vmem, size = 0x2000, scoped, tag = 'output window, operand 0']
    #allocation3 [shape = 's32[2]{0}', space=sflag, size = 0x8, scoped, tag = 'scoped memory for tpu_custom_call.1']
    %9 = vsyncpa [#allocation3], 0
    %s10 = scalar_lea.sflag [#allocation3], 1
    %11 = vsyncpa %s10, 0
    loop: start=0, step=1, limit=4
    $region2: #{tpu_custom_call.1} parent=1 // loop_pre_header
      _
    $region3: #{tpu_custom_call.1} parent=1 // loop_header
      %s13 = sphi 0, %s17
      %p14 = scmp.ge.s32.totalorder %s13, 4
      %s23 = sphi 0, %s25
      %s26 = sphi 0, %s23
      %s27 = sphi 0, %s26
      %s43 = sphi 0, %s27
      %s47 = sphi 0, %s47
      %s49 = sphi 0, %s47
      %s50 = sphi 0, %s49
      %s64 = sphi 0, %s50
      %s68 = sphi 0, %s68
      %s70 = sphi 0, %s68
      %s71 = sphi 0, %s70
      %s85 = sphi 0, %s71
      %s89 = sphi 0, %s89
      %s91 = sphi 0, %s89
      %s92 = sphi 0, %s91
      %s106 = sphi 0, %s92
      %s112 = sphi 0, %s114
      %s115 = sphi 0, %s112
      %s116 = sphi 0, %s115
      %s132 = sphi 0, %s116
    $region4: #{tpu_custom_call.1} parent=1 // loop_header_branch
      %16 = sbr.rel (%p14) target = $region8
    $region5: #{tpu_custom_call.1} parent=1 // loop_body
      %s18 = ssub.s32 %s13, 1
      %s19 = ssub.s32 %s13, 2
      %s20 = sadd.s32 %s13, 1
      %s21 = ssub.s32 %s13, %s20
      %p22 = scmp.eq.s32.totalorder %s21, 0
      %s24 = sadd.s32 %s23, 1
      %s25 = scalar_select %p22, %s23, %s24
      %p28 = pneg %p22
      %p29 = scmp.eq.s32.totalorder %s13, 1
      %p30 = por %p28, %p29
      %p31 = scmp.ne.s32.totalorder %s23, %s26
      %p32 = scmp.eq.s32.totalorder %s13, 0
      %p33 = por %p31, %p32
      %p34 = scmp.ne.s32.totalorder %s23, %s26
      %p35 = scmp.eq.s32.totalorder %s18, 1
      %p36 = por %p34, %p35
      %p37 = scmp.ne.s32.totalorder %s26, %s27
      %p38 = scmp.eq.s32.totalorder %s18, 0
      %p39 = por %p37, %p38
      %p40 = scmp.ne.s32.totalorder %s26, %s27
      %p41 = scmp.eq.s32.totalorder %s19, 1
      %p42 = por %p40, %p41
      %p44 = scmp.ne.s32.totalorder %s27, %s43
      %p45 = scmp.eq.s32.totalorder %s19, 0
      %p46 = por %p44, %p45
      %s48 = sadd.s32 %s47, 1
      %p51 = scmp.eq.s32.totalorder %s13, 1
      %p52 = scmp.ne.s32.totalorder %s47, %s49
      %p53 = scmp.eq.s32.totalorder %s13, 0
      %p54 = por %p52, %p53
      %p55 = scmp.ne.s32.totalorder %s47, %s49
      %p56 = scmp.eq.s32.totalorder %s18, 1
      %p57 = por %p55, %p56
      %p58 = scmp.ne.s32.totalorder %s49, %s50
      %p59 = scmp.eq.s32.totalorder %s18, 0
      %p60 = por %p58, %p59
      %p61 = scmp.ne.s32.totalorder %s49, %s50
      %p62 = scmp.eq.s32.totalorder %s19, 1
      %p63 = por %p61, %p62
      %p65 = scmp.ne.s32.totalorder %s50, %s64
      %p66 = scmp.eq.s32.totalorder %s19, 0
      %p67 = por %p65, %p66
      %s69 = sadd.s32 %s68, 1
      %p72 = scmp.eq.s32.totalorder %s13, 1
      %p73 = scmp.ne.s32.totalorder %s68, %s70
      %p74 = scmp.eq.s32.totalorder %s13, 0
      %p75 = por %p73, %p74
      %p76 = scmp.ne.s32.totalorder %s68, %s70
      %p77 = scmp.eq.s32.totalorder %s18, 1
      %p78 = por %p76, %p77
      %p79 = scmp.ne.s32.totalorder %s70, %s71
      %p80 = scmp.eq.s32.totalorder %s18, 0
      %p81 = por %p79, %p80
      %p82 = scmp.ne.s32.totalorder %s70, %s71
      %p83 = scmp.eq.s32.totalorder %s19, 1
      %p84 = por %p82, %p83
      %p86 = scmp.ne.s32.totalorder %s71, %s85
      %p87 = scmp.eq.s32.totalorder %s19, 0
      %p88 = por %p86, %p87
      %s90 = sadd.s32 %s89, 1
      %p93 = scmp.eq.s32.totalorder %s13, 1
      %p94 = scmp.ne.s32.totalorder %s89, %s91
      %p95 = scmp.eq.s32.totalorder %s13, 0
      %p96 = por %p94, %p95
      %p97 = scmp.ne.s32.totalorder %s89, %s91
      %p98 = scmp.eq.s32.totalorder %s18, 1
      %p99 = por %p97, %p98
      %p100 = scmp.ne.s32.totalorder %s91, %s92
      %p101 = scmp.eq.s32.totalorder %s18, 0
      %p102 = por %p100, %p101
      %p103 = scmp.ne.s32.totalorder %s91, %s92
      %p104 = scmp.eq.s32.totalorder %s19, 1
      %p105 = por %p103, %p104
      %p107 = scmp.ne.s32.totalorder %s92, %s106
      %p108 = scmp.eq.s32.totalorder %s19, 0
      %p109 = por %p107, %p108
      %s110 = ssub.s32 %s13, %s20
      %p111 = scmp.eq.s32.totalorder %s110, 0
      %s113 = sadd.s32 %s112, 1
      %s114 = scalar_select %p111, %s112, %s113
      %p117 = pneg %p111
      %p118 = scmp.eq.s32.totalorder %s13, 1
      %p119 = por %p117, %p118
      %p120 = scmp.ne.s32.totalorder %s112, %s115
      %p121 = scmp.eq.s32.totalorder %s13, 0
      %p122 = por %p120, %p121
      %p123 = scmp.ne.s32.totalorder %s112, %s115
      %p124 = scmp.eq.s32.totalorder %s18, 1
      %p125 = por %p123, %p124
      %p126 = scmp.ne.s32.totalorder %s115, %s116
      %p127 = scmp.eq.s32.totalorder %s18, 0
      %p128 = por %p126, %p127
      %p129 = scmp.ne.s32.totalorder %s115, %s116
      %p130 = scmp.eq.s32.totalorder %s19, 1
      %p131 = por %p129, %p130
      %p133 = scmp.ne.s32.totalorder %s116, %s132
      %p134 = scmp.eq.s32.totalorder %s19, 0
      %p135 = por %p133, %p134
      %p136 = scmp.le.s32.totalorder 1, %s13
      %p137 = scmp.lt.s32.totalorder %s13, 3
      %p138 = pnand %p136, %p137
      %p139 = pneg %p138
      // Predicated region
      $region9: #{tpu_custom_call.1} parent=5 // pred_check
        _
      $region10: #{tpu_custom_call.1} parent=5 // pred_check_branch
        %141 = sbr.rel (%p138) target = $region12
      $region11: #{tpu_custom_call.1} parent=5 // pred_region
        %s142 = ssub.s32 %s13, 1
        // Predicated region
        $region13: #{tpu_custom_call.1} parent=11 // pred_check
          %p143 = pneg %p60
        $region14: #{tpu_custom_call.1} parent=11 // pred_check_branch
          %145 = sbr.rel (%p143) target = $region16
        $region15: #{tpu_custom_call.1} parent=11 // pred_region
          _
        $region16: #{tpu_custom_call.1} parent=11 // pred_fallthru
          _
        // Predicated region
        $region17: #{tpu_custom_call.1} parent=11 // pred_check
          %p146 = pneg %p81
        $region18: #{tpu_custom_call.1} parent=11 // pred_check_branch
          %148 = sbr.rel (%p146) target = $region20
        $region19: #{tpu_custom_call.1} parent=11 // pred_region
          _
        $region20: #{tpu_custom_call.1} parent=11 // pred_fallthru
          _
        // Predicated region
        $region21: #{tpu_custom_call.1} parent=11 // pred_check
          %p149 = pneg %p102
        $region22: #{tpu_custom_call.1} parent=11 // pred_check_branch
          %151 = sbr.rel (%p149) target = $region24
        $region23: #{tpu_custom_call.1} parent=11 // pred_region
          _
        $region24: #{tpu_custom_call.1} parent=11 // pred_fallthru
          _
      $region12: #{tpu_custom_call.1} parent=5 // pred_fallthru
        _
      %p152 = scmp.lt.s32.totalorder %s13, 2
      // Predicated region
      $region25: #{tpu_custom_call.1} parent=5 // pred_check
        %p153 = pneg %p152
      $region26: #{tpu_custom_call.1} parent=5 // pred_check_branch
        %155 = sbr.rel (%p153) target = $region28
      $region27: #{tpu_custom_call.1} parent=5 // pred_region
        // Predicated region
        $region29: #{tpu_custom_call.1} parent=27 // pred_check
          %p156 = pneg %p33
        $region30: #{tpu_custom_call.1} parent=27 // pred_check_branch
          %158 = sbr.rel (%p156) target = $region32
        $region31: #{tpu_custom_call.1} parent=27 // pred_region
          %p159 = scmp.lt.s32.totalorder %s13, 1
          %s160 = scalar_select %p159, %s13, 1
          %s161 = smul.addr %s160, 8
          %s162 = scalar_lea.vmem %s0, %s161
        $region32: #{tpu_custom_call.1} parent=27 // pred_fallthru
          _
      $region28: #{tpu_custom_call.1} parent=5 // pred_fallthru
        _
      %p163 = scmp.le.s32.totalorder 1, %s13
      %p164 = scmp.lt.s32.totalorder %s13, 3
      %p165 = pnand %p163, %p164
      %p166 = pneg %p165
      // Predicated region
      $region33: #{tpu_custom_call.1} parent=5 // pred_check
        _
      $region34: #{tpu_custom_call.1} parent=5 // pred_check_branch
        %168 = sbr.rel (%p165) target = $region36
      $region35: #{tpu_custom_call.1} parent=5 // pred_region
        %s169 = ssub.s32 %s13, 1
        %p170 = scmp.lt.s32.totalorder %s18, 1
        %s171 = scalar_select %p170, %s18, 1
        %s172 = smul.addr %s171, 8
        %s173 = scalar_lea.vmem %s0, %s172
        %p174 = pneg %p39
        %p175 = pneg %p36
        %p176 = pneg %p60
        %p177 = pneg %p57
        %p178 = pneg %p81
        %p179 = pneg %p78
        %p180 = pneg %p102
        %p181 = pneg %p99
        %p182 = pneg %p128
        %p183 = pneg %p125
        %s184 = sand.u32 %s115, 1
        %s185 = scalar_lea.sflag [#allocation3], %s184
        %s186 = sand.u32 %s115, 1
        %s187 = smul.addr %s186, 8
        %s188 = scalar_lea.vmem [#allocation2], %s187
        %p189 = scmp.lt.s32.totalorder %s18, 1
        %s190 = scalar_select %p189, %s18, 1
        %s191 = smul.addr %s190, 8
        %s192 = scalar_lea.vmem %s0, %s191
        %v193 = vld [vmem:[%s192] sm:$0xff]
        %v194 = vld [vmem:[%s1] sm:$0xff]
        %v195 = vld [vmem:[%s1 + $0x8] sm:$0xff]
        %v196 = vld [vmem:[%s1 + $0x10] sm:$0xff]
        %v197 = vld [vmem:[%s1 + $0x18] sm:$0xff]
        %v198 = vld [vmem:[%s1 + $0x20] sm:$0xff]
        %v199 = vld [vmem:[%s1 + $0x28] sm:$0xff]
        %v200 = vld [vmem:[%s1 + $0x30] sm:$0xff]
        %v201 = vld [vmem:[%s1 + $0x38] sm:$0xff]
        %v202 = vld [vmem:[%s1 + $0x40] sm:$0xff]
        %v203 = vld [vmem:[%s1 + $0x48] sm:$0xff]
        %v204 = vld [vmem:[%s1 + $0x50] sm:$0xff]
        %v205 = vld [vmem:[%s1 + $0x58] sm:$0xff]
        %v206 = vld [vmem:[%s1 + $0x60] sm:$0xff]
        %v207 = vld [vmem:[%s1 + $0x68] sm:$0xff]
        %v208 = vld [vmem:[%s1 + $0x70] sm:$0xff]
        %v209 = vld [vmem:[%s1 + $0x78] sm:$0xff]
        %vm210 = vcmask 261120
        %v212 = vsel %vm210, %v193, 0
        %214 = vmatpush.msra.mxu0 0.0
        %215 = vmatpush.msra.mxu0 0.0
        %216 = vmatpush.msra.mxu0 0.0
        %217 = vmatpush.msra.mxu0 0.0
        %218 = vmatpush.msra.mxu0 0.0
        %219 = vmatpush.msra.mxu0 0.0
        %220 = vmatpush.msra.mxu0 0.0
        %221 = vmatpush.msra.mxu0 0.0
        %222 = vmatpush.msra.mxu0 0.0
        %223 = vmatpush.msra.mxu0 0.0
        %224 = vmatpush.msra.mxu0 0.0
        %225 = vmatpush.msra.mxu0 0.0
        %226 = vmatpush.msra.mxu0 %v197
        %227 = vmatpush.msra.mxu0 %v196
        %228 = vmatpush.msra.mxu0 %v195
        %229 = vmatpush.msra.mxu0 %v194
        %230 = vmatmul.f32.gmra.mxu0 %v212
        %v231 = vpop.f32.mrf.mxu0
        %v232 = vadd.f32 0.0, %v231
        %233 = vdwg.mxu0
        %234 = vmatpush.msra.mxu0 0.0
        %235 = vmatpush.msra.mxu0 0.0
        %236 = vmatpush.msra.mxu0 0.0
        %237 = vmatpush.msra.mxu0 0.0
        %238 = vmatpush.msra.mxu0 0.0
        %239 = vmatpush.msra.mxu0 0.0
        %240 = vmatpush.msra.mxu0 0.0
        %241 = vmatpush.msra.mxu0 0.0
        %242 = vmatpush.msra.mxu0 0.0
        %243 = vmatpush.msra.mxu0 0.0
        %244 = vmatpush.msra.mxu0 0.0
        %245 = vmatpush.msra.mxu0 0.0
        %246 = vmatpush.msra.mxu0 %v201
        %247 = vmatpush.msra.mxu0 %v200
        %248 = vmatpush.msra.mxu0 %v199
        %249 = vmatpush.msra.mxu0 %v198
        %250 = vmatmul.f32.gmra.mxu0 %v212
        %v251 = vpop.f32.mrf.mxu0
        %v252 = vadd.f32 0.0, %v251
        %253 = vdwg.mxu0
        %254 = vmatpush.msra.mxu0 0.0
        %255 = vmatpush.msra.mxu0 0.0
        %256 = vmatpush.msra.mxu0 0.0
        %257 = vmatpush.msra.mxu0 0.0
        %258 = vmatpush.msra.mxu0 0.0
        %259 = vmatpush.msra.mxu0 0.0
        %260 = vmatpush.msra.mxu0 0.0
        %261 = vmatpush.msra.mxu0 0.0
        %262 = vmatpush.msra.mxu0 0.0
        %263 = vmatpush.msra.mxu0 0.0
        %264 = vmatpush.msra.mxu0 0.0
        %265 = vmatpush.msra.mxu0 0.0
        %266 = vmatpush.msra.mxu0 %v205
        %267 = vmatpush.msra.mxu0 %v204
        %268 = vmatpush.msra.mxu0 %v203
        %269 = vmatpush.msra.mxu0 %v202
        %270 = vmatmul.f32.gmra.mxu0 %v212
        %v271 = vpop.f32.mrf.mxu0
        %v272 = vadd.f32 0.0, %v271
        %273 = vdwg.mxu0
        %274 = vmatpush.msra.mxu0 0.0
        %275 = vmatpush.msra.mxu0 0.0
        %276 = vmatpush.msra.mxu0 0.0
        %277 = vmatpush.msra.mxu0 0.0
        %278 = vmatpush.msra.mxu0 0.0
        %279 = vmatpush.msra.mxu0 0.0
        %280 = vmatpush.msra.mxu0 0.0
        %281 = vmatpush.msra.mxu0 0.0
        %282 = vmatpush.msra.mxu0 0.0
        %283 = vmatpush.msra.mxu0 0.0
        %284 = vmatpush.msra.mxu0 0.0
        %285 = vmatpush.msra.mxu0 0.0
        %286 = vmatpush.msra.mxu0 %v209
        %287 = vmatpush.msra.mxu0 %v208
        %288 = vmatpush.msra.mxu0 %v207
        %289 = vmatpush.msra.mxu0 %v206
        %290 = vmatmul.f32.gmra.mxu0 %v212
        %v291 = vpop.f32.mrf.mxu0
        %v292 = vadd.f32 0.0, %v291
        %293 = vdwg.mxu0
        %295 = vrot.lane.b32.xlu0 %v232, 120
        %v296 = vpop.permute.xlu0 %295
        %vm297 = vcmask 64512
        %v298 = vsel %vm297, %v232, 0
        %v300 = vsel %vm297, %v296, 0
        %302 = vmatpush.xpose.msra.mxu0 0.0
        %303 = vmatpush.xpose.msra.mxu0 0.0
        %304 = vmatpush.xpose.msra.mxu0 0.0
        %305 = vmatpush.xpose.msra.mxu0 0.0
        %306 = vmatpush.xpose.msra.mxu0 0.0
        %307 = vmatpush.xpose.msra.mxu0 0.0
        %308 = vmatpush.xpose.msra.mxu0 0.0
        %309 = vmatpush.xpose.msra.mxu0 0.0
        %310 = vmatpush.xpose.msra.mxu0 0.0
        %311 = vmatpush.xpose.msra.mxu0 0.0
        %312 = vmatpush.xpose.msra.mxu0 0.0
        %313 = vmatpush.xpose.msra.mxu0 0.0
        %314 = vmatpush.xpose.msra.mxu0 0.0
        %315 = vmatpush.xpose.msra.mxu0 0.0
        %316 = vmatpush.xpose.msra.mxu0 0.0
        %317 = vmatpush.xpose.msra.mxu0 %v300
        %318 = vmatmul.f32.gmra.mxu0 %v298
        %v319 = vpop.f32.mrf.mxu0
        %v320 = vadd.f32 0.0, %v319
        %321 = vdwg.mxu0
        %323 = vrot.lane.b32.xlu0 %v252, 120
        %v324 = vpop.permute.xlu0 %323
        %v325 = vsel %vm297, %v252, 0
        %v327 = vsel %vm297, %v324, 0
        %329 = vmatpush.xpose.msra.mxu0 0.0
        %330 = vmatpush.xpose.msra.mxu0 0.0
        %331 = vmatpush.xpose.msra.mxu0 0.0
        %332 = vmatpush.xpose.msra.mxu0 0.0
        %333 = vmatpush.xpose.msra.mxu0 0.0
        %334 = vmatpush.xpose.msra.mxu0 0.0
        %335 = vmatpush.xpose.msra.mxu0 0.0
        %336 = vmatpush.xpose.msra.mxu0 0.0
        %337 = vmatpush.xpose.msra.mxu0 0.0
        %338 = vmatpush.xpose.msra.mxu0 0.0
        %339 = vmatpush.xpose.msra.mxu0 0.0
        %340 = vmatpush.xpose.msra.mxu0 0.0
        %341 = vmatpush.xpose.msra.mxu0 0.0
        %342 = vmatpush.xpose.msra.mxu0 0.0
        %343 = vmatpush.xpose.msra.mxu0 0.0
        %344 = vmatpush.xpose.msra.mxu0 %v327
        %345 = vmatmul.f32.gmra.mxu0 %v325
        %v346 = vpop.f32.mrf.mxu0
        %v347 = vadd.f32 0.0, %v346
        %348 = vdwg.mxu0
        %350 = vrot.lane.b32.xlu0 %v272, 120
        %v351 = vpop.permute.xlu0 %350
        %v352 = vsel %vm297, %v272, 0
        %v354 = vsel %vm297, %v351, 0
        %356 = vmatpush.xpose.msra.mxu0 0.0
        %357 = vmatpush.xpose.msra.mxu0 0.0
        %358 = vmatpush.xpose.msra.mxu0 0.0
        %359 = vmatpush.xpose.msra.mxu0 0.0
        %360 = vmatpush.xpose.msra.mxu0 0.0
        %361 = vmatpush.xpose.msra.mxu0 0.0
        %362 = vmatpush.xpose.msra.mxu0 0.0
        %363 = vmatpush.xpose.msra.mxu0 0.0
        %364 = vmatpush.xpose.msra.mxu0 0.0
        %365 = vmatpush.xpose.msra.mxu0 0.0
        %366 = vmatpush.xpose.msra.mxu0 0.0
        %367 = vmatpush.xpose.msra.mxu0 0.0
        %368 = vmatpush.xpose.msra.mxu0 0.0
        %369 = vmatpush.xpose.msra.mxu0 0.0
        %370 = vmatpush.xpose.msra.mxu0 0.0
        %371 = vmatpush.xpose.msra.mxu0 %v354
        %372 = vmatmul.f32.gmra.mxu0 %v352
        %v373 = vpop.f32.mrf.mxu0
        %v374 = vadd.f32 0.0, %v373
        %375 = vdwg.mxu0
        %377 = vrot.lane.b32.xlu0 %v292, 120
        %v378 = vpop.permute.xlu0 %377
        %v379 = vsel %vm297, %v292, 0
        %v381 = vsel %vm297, %v378, 0
        %383 = vmatpush.xpose.msra.mxu0 0.0
        %384 = vmatpush.xpose.msra.mxu0 0.0
        %385 = vmatpush.xpose.msra.mxu0 0.0
        %386 = vmatpush.xpose.msra.mxu0 0.0
        %387 = vmatpush.xpose.msra.mxu0 0.0
        %388 = vmatpush.xpose.msra.mxu0 0.0
        %389 = vmatpush.xpose.msra.mxu0 0.0
        %390 = vmatpush.xpose.msra.mxu0 0.0
        %391 = vmatpush.xpose.msra.mxu0 0.0
        %392 = vmatpush.xpose.msra.mxu0 0.0
        %393 = vmatpush.xpose.msra.mxu0 0.0
        %394 = vmatpush.xpose.msra.mxu0 0.0
        %395 = vmatpush.xpose.msra.mxu0 0.0
        %396 = vmatpush.xpose.msra.mxu0 0.0
        %397 = vmatpush.xpose.msra.mxu0 0.0
        %398 = vmatpush.xpose.msra.mxu0 %v381
        %399 = vmatmul.f32.gmra.mxu0 %v379
        %v400 = vpop.f32.mrf.mxu0
        %v401 = vadd.f32 0.0, %v400
        %402 = vdwg.mxu0
        %v403 = vmul.f32 %v320, 0.17677669
        %v404 = vmul.f32 %v347, 0.17677669
        %v405 = vmul.f32 %v374, 0.17677669
        %v406 = vmul.f32 %v401, 0.17677669
        %v407 = vlaneseq
        %v408 = vshrl.u32 %v407, 7
        %v409 = vlaneseq
        %v410 = vand.u32 %v409, 127
        %vm411 = vcmp.le.s32.totalorder %v410, %v408
        %v412 = vsel %vm411, 1, 0
        %vm413 = vcmp.eq.s32.totalorder %v412, 1
        %v414 = vsel %vm413, %v403, -1e+30
        %v415 = vsel %vm413, %v404, -1e+30
        %v416 = vsel %vm413, %v405, -1e+30
        %v417 = vsel %vm413, %v406, -1e+30
        %v418 = vsel %vm297, %v414, -inf
        %419 = vmax.xlane.f32.xlu0 %v418
        %v420 = vpop.xlane.xlu0 %419
        %v421 = vsel %vm297, %v415, -inf
        %422 = vmax.xlane.f32.xlu0 %v421
        %v423 = vpop.xlane.xlu0 %422
        %v424 = vsel %vm297, %v416, -inf
        %425 = vmax.xlane.f32.xlu0 %v424
        %v426 = vpop.xlane.xlu0 %425
        %v427 = vsel %vm297, %v417, -inf
        %428 = vmax.xlane.f32.xlu0 %v427
        %v429 = vpop.xlane.xlu0 %428
        %v430 = vsub.f32 %v414, %v420
        %v431 = vsub.f32 %v415, %v423
        %v432 = vsub.f32 %v416, %v426
        %v433 = vsub.f32 %v417, %v429
        %v434 = vmul.f32 %v430, 1.442695
        %v435 = vpow.pop %v434
        %v436 = vmul.f32 %v431, 1.442695
        %v437 = vpow.pop %v436
        %v438 = vmul.f32 %v432, 1.442695
        %v439 = vpow.pop %v438
        %v440 = vmul.f32 %v433, 1.442695
        %v441 = vpow.pop %v440
        %v442 = vsel %vm297, %v435, 0.0
        %443 = vadd.xlane.f32.xlu0 %v442
        %v444 = vpop.xlane.xlu0 %443
        %v445 = vsel %vm297, %v437, 0.0
        %446 = vadd.xlane.f32.xlu0 %v445
        %v447 = vpop.xlane.xlu0 %446
        %v448 = vsel %vm297, %v439, 0.0
        %449 = vadd.xlane.f32.xlu0 %v448
        %v450 = vpop.xlane.xlu0 %449
        %v451 = vsel %vm297, %v441, 0.0
        %452 = vadd.xlane.f32.xlu0 %v451
        %v453 = vpop.xlane.xlu0 %452
        %v454 = vrcp.pop %v444
        %v455 = vmul.f32 %v444, %v454
        %v456 = vsub.f32 1.0, %v455
        %v457 = vmul.f32 %v454, %v456
        %v458 = vadd.f32 %v454, %v457
        %vm459 = vweird.f32 %v444
        %vm460 = vweird.f32 %v454
        %vm461 = vmor %vm459, %vm460
        %v462 = vsel %vm461, %v454, %v458
        %v463 = vand.u32 2147483647, %v444
        %vm464 = vcmp.eq.f32.partialorder %v463, 8.507059e+37
        %v465 = vand.u32 %v444, 2147483648
        %v466 = vor.u32 1.1754944e-38, %v465
        %v467 = vsel %vm464, %v466, %v462
        %v468 = vmul.f32 %v435, %v467
        %v469 = vrcp.pop %v447
        %v470 = vmul.f32 %v447, %v469
        %v471 = vsub.f32 1.0, %v470
        %v472 = vmul.f32 %v469, %v471
        %v473 = vadd.f32 %v469, %v472
        %vm474 = vweird.f32 %v447
        %vm475 = vweird.f32 %v469
        %vm476 = vmor %vm474, %vm475
        %v477 = vsel %vm476, %v469, %v473
        %v478 = vand.u32 2147483647, %v447
        %vm479 = vcmp.eq.f32.partialorder %v478, 8.507059e+37
        %v480 = vand.u32 %v447, 2147483648
        %v481 = vor.u32 1.1754944e-38, %v480
        %v482 = vsel %vm479, %v481, %v477
        %v483 = vmul.f32 %v437, %v482
        %v484 = vrcp.pop %v450
        %v485 = vmul.f32 %v450, %v484
        %v486 = vsub.f32 1.0, %v485
        %v487 = vmul.f32 %v484, %v486
        %v488 = vadd.f32 %v484, %v487
        %vm489 = vweird.f32 %v450
        %vm490 = vweird.f32 %v484
        %vm491 = vmor %vm489, %vm490
        %v492 = vsel %vm491, %v484, %v488
        %v493 = vand.u32 2147483647, %v450
        %vm494 = vcmp.eq.f32.partialorder %v493, 8.507059e+37
        %v495 = vand.u32 %v450, 2147483648
        %v496 = vor.u32 1.1754944e-38, %v495
        %v497 = vsel %vm494, %v496, %v492
        %v498 = vmul.f32 %v439, %v497
        %v499 = vrcp.pop %v453
        %v500 = vmul.f32 %v453, %v499
        %v501 = vsub.f32 1.0, %v500
        %v502 = vmul.f32 %v499, %v501
        %v503 = vadd.f32 %v499, %v502
        %vm504 = vweird.f32 %v453
        %vm505 = vweird.f32 %v499
        %vm506 = vmor %vm504, %vm505
        %v507 = vsel %vm506, %v499, %v503
        %v508 = vand.u32 2147483647, %v453
        %vm509 = vcmp.eq.f32.partialorder %v508, 8.507059e+37
        %v510 = vand.u32 %v453, 2147483648
        %v511 = vor.u32 1.1754944e-38, %v510
        %v512 = vsel %vm509, %v511, %v507
        %v513 = vmul.f32 %v441, %v512
        %514 = vrot.lane.b32.xlu0 %v232, 112
        %v515 = vpop.permute.xlu0 %514
        %v518 = vsel %vm297, %v468, 0
        %520 = vmatpush.msra.mxu0 0.0
        %521 = vmatpush.msra.mxu0 0.0
        %522 = vmatpush.msra.mxu0 0.0
        %523 = vmatpush.msra.mxu0 0.0
        %524 = vmatpush.msra.mxu0 0.0
        %525 = vmatpush.msra.mxu0 0.0
        %526 = vmatpush.msra.mxu0 0.0
        %527 = vmatpush.msra.mxu0 0.0
        %528 = vmatpush.msra.mxu0 0.0
        %529 = vmatpush.msra.mxu0 0.0
        %530 = vmatpush.msra.mxu0 0.0
        %531 = vmatpush.msra.mxu0 0.0
        %532 = vmatpush.msra.mxu0 0.0
        %533 = vmatpush.msra.mxu0 0.0
        %534 = vmatpush.msra.mxu0 0.0
        %535 = vmatpush.msra.mxu0 %v515
        %536 = vmatmul.f32.gmra.mxu0 %v518
        %v537 = vpop.f32.mrf.mxu0
        %v538 = vadd.f32 0.0, %v537
        %539 = vdwg.mxu0
        %540 = vrot.lane.b32.xlu0 %v252, 112
        %v541 = vpop.permute.xlu0 %540
        %v544 = vsel %vm297, %v483, 0
        %546 = vmatpush.msra.mxu0 0.0
        %547 = vmatpush.msra.mxu0 0.0
        %548 = vmatpush.msra.mxu0 0.0
        %549 = vmatpush.msra.mxu0 0.0
        %550 = vmatpush.msra.mxu0 0.0
        %551 = vmatpush.msra.mxu0 0.0
        %552 = vmatpush.msra.mxu0 0.0
        %553 = vmatpush.msra.mxu0 0.0
        %554 = vmatpush.msra.mxu0 0.0
        %555 = vmatpush.msra.mxu0 0.0
        %556 = vmatpush.msra.mxu0 0.0
        %557 = vmatpush.msra.mxu0 0.0
        %558 = vmatpush.msra.mxu0 0.0
        %559 = vmatpush.msra.mxu0 0.0
        %560 = vmatpush.msra.mxu0 0.0
        %561 = vmatpush.msra.mxu0 %v541
        %562 = vmatmul.f32.gmra.mxu0 %v544
        %v563 = vpop.f32.mrf.mxu0
        %v564 = vadd.f32 0.0, %v563
        %565 = vdwg.mxu0
        %566 = vrot.lane.b32.xlu0 %v272, 112
        %v567 = vpop.permute.xlu0 %566
        %v570 = vsel %vm297, %v498, 0
        %572 = vmatpush.msra.mxu0 0.0
        %573 = vmatpush.msra.mxu0 0.0
        %574 = vmatpush.msra.mxu0 0.0
        %575 = vmatpush.msra.mxu0 0.0
        %576 = vmatpush.msra.mxu0 0.0
        %577 = vmatpush.msra.mxu0 0.0
        %578 = vmatpush.msra.mxu0 0.0
        %579 = vmatpush.msra.mxu0 0.0
        %580 = vmatpush.msra.mxu0 0.0
        %581 = vmatpush.msra.mxu0 0.0
        %582 = vmatpush.msra.mxu0 0.0
        %583 = vmatpush.msra.mxu0 0.0
        %584 = vmatpush.msra.mxu0 0.0
        %585 = vmatpush.msra.mxu0 0.0
        %586 = vmatpush.msra.mxu0 0.0
        %587 = vmatpush.msra.mxu0 %v567
        %588 = vmatmul.f32.gmra.mxu0 %v570
        %v589 = vpop.f32.mrf.mxu0
        %v590 = vadd.f32 0.0, %v589
        %591 = vdwg.mxu0
        %592 = vrot.lane.b32.xlu0 %v292, 112
        %v593 = vpop.permute.xlu0 %592
        %v596 = vsel %vm297, %v513, 0
        %598 = vmatpush.msra.mxu0 0.0
        %599 = vmatpush.msra.mxu0 0.0
        %600 = vmatpush.msra.mxu0 0.0
        %601 = vmatpush.msra.mxu0 0.0
        %602 = vmatpush.msra.mxu0 0.0
        %603 = vmatpush.msra.mxu0 0.0
        %604 = vmatpush.msra.mxu0 0.0
        %605 = vmatpush.msra.mxu0 0.0
        %606 = vmatpush.msra.mxu0 0.0
        %607 = vmatpush.msra.mxu0 0.0
        %608 = vmatpush.msra.mxu0 0.0
        %609 = vmatpush.msra.mxu0 0.0
        %610 = vmatpush.msra.mxu0 0.0
        %611 = vmatpush.msra.mxu0 0.0
        %612 = vmatpush.msra.mxu0 0.0
        %613 = vmatpush.msra.mxu0 %v593
        %614 = vmatmul.f32.gmra.mxu0 %v596
        %v615 = vpop.f32.mrf.mxu0
        %v616 = vadd.f32 0.0, %v615
        %617 = vdwg.mxu0
        %v618 = vld [vmem:[%s2] sm:$0xff]
        %v619 = vld [vmem:[%s2 + $0x8] sm:$0xff]
        %v620 = vld [vmem:[%s2 + $0x10] sm:$0xff]
        %v621 = vld [vmem:[%s2 + $0x18] sm:$0xff]
        %v623 = vsel %vm297, %v538, 0
        %625 = vmatpush.msra.mxu0 0.0
        %626 = vmatpush.msra.mxu0 0.0
        %627 = vmatpush.msra.mxu0 0.0
        %628 = vmatpush.msra.mxu0 0.0
        %629 = vmatpush.msra.mxu0 0.0
        %630 = vmatpush.msra.mxu0 0.0
        %631 = vmatpush.msra.mxu0 0.0
        %632 = vmatpush.msra.mxu0 0.0
        %633 = vmatpush.msra.mxu0 0.0
        %634 = vmatpush.msra.mxu0 0.0
        %635 = vmatpush.msra.mxu0 0.0
        %636 = vmatpush.msra.mxu0 0.0
        %637 = vmatpush.msra.mxu0 0.0
        %638 = vmatpush.msra.mxu0 0.0
        %639 = vmatpush.msra.mxu0 0.0
        %640 = vmatpush.msra.mxu0 %v618
        %641 = vmatmul.f32.gmra.mxu0 %v623
        %v642 = vpop.f32.mrf.mxu0
        %v643 = vadd.f32 0.0, %v642
        %644 = vdwg.mxu0
        %v646 = vsel %vm297, %v564, 0
        %648 = vmatpush.msra.mxu0 0.0
        %649 = vmatpush.msra.mxu0 0.0
        %650 = vmatpush.msra.mxu0 0.0
        %651 = vmatpush.msra.mxu0 0.0
        %652 = vmatpush.msra.mxu0 0.0
        %653 = vmatpush.msra.mxu0 0.0
        %654 = vmatpush.msra.mxu0 0.0
        %655 = vmatpush.msra.mxu0 0.0
        %656 = vmatpush.msra.mxu0 0.0
        %657 = vmatpush.msra.mxu0 0.0
        %658 = vmatpush.msra.mxu0 0.0
        %659 = vmatpush.msra.mxu0 0.0
        %660 = vmatpush.msra.mxu0 0.0
        %661 = vmatpush.msra.mxu0 0.0
        %662 = vmatpush.msra.mxu0 0.0
        %663 = vmatpush.msra.mxu0 %v619
        %664 = vmatmul.f32.gmra.mxu0 %v646
        %v665 = vpop.f32.mrf.mxu0
        %v666 = vadd.f32 0.0, %v665
        %667 = vdwg.mxu0
        %v669 = vsel %vm297, %v590, 0
        %671 = vmatpush.msra.mxu0 0.0
        %672 = vmatpush.msra.mxu0 0.0
        %673 = vmatpush.msra.mxu0 0.0
        %674 = vmatpush.msra.mxu0 0.0
        %675 = vmatpush.msra.mxu0 0.0
        %676 = vmatpush.msra.mxu0 0.0
        %677 = vmatpush.msra.mxu0 0.0
        %678 = vmatpush.msra.mxu0 0.0
        %679 = vmatpush.msra.mxu0 0.0
        %680 = vmatpush.msra.mxu0 0.0
        %681 = vmatpush.msra.mxu0 0.0
        %682 = vmatpush.msra.mxu0 0.0
        %683 = vmatpush.msra.mxu0 0.0
        %684 = vmatpush.msra.mxu0 0.0
        %685 = vmatpush.msra.mxu0 0.0
        %686 = vmatpush.msra.mxu0 %v620
        %687 = vmatmul.f32.gmra.mxu0 %v669
        %v688 = vpop.f32.mrf.mxu0
        %v689 = vadd.f32 0.0, %v688
        %690 = vdwg.mxu0
        %v692 = vsel %vm297, %v616, 0
        %694 = vmatpush.msra.mxu0 0.0
        %695 = vmatpush.msra.mxu0 0.0
        %696 = vmatpush.msra.mxu0 0.0
        %697 = vmatpush.msra.mxu0 0.0
        %698 = vmatpush.msra.mxu0 0.0
        %699 = vmatpush.msra.mxu0 0.0
        %700 = vmatpush.msra.mxu0 0.0
        %701 = vmatpush.msra.mxu0 0.0
        %702 = vmatpush.msra.mxu0 0.0
        %703 = vmatpush.msra.mxu0 0.0
        %704 = vmatpush.msra.mxu0 0.0
        %705 = vmatpush.msra.mxu0 0.0
        %706 = vmatpush.msra.mxu0 0.0
        %707 = vmatpush.msra.mxu0 0.0
        %708 = vmatpush.msra.mxu0 0.0
        %709 = vmatpush.msra.mxu0 %v621
        %710 = vmatmul.f32.gmra.mxu0 %v692
        %v711 = vpop.f32.mrf.mxu0
        %v712 = vadd.f32 0.0, %v711
        %713 = vdwg.mxu0
        %v714 = vsel %vm210, %v643, 0.0
        %v715 = vsel %vm210, %v666, 0.0
        %v716 = vadd.f32 %v714, %v715
        %v717 = vsel %vm210, %v689, 0.0
        %v718 = vadd.f32 %v716, %v717
        %v719 = vsel %vm210, %v712, 0.0
        %v720 = vadd.f32 %v718, %v719
        %v721 = vld [vmem:[%s3] sm:$0x1]
        %v723 = vperm.slane %v721, 0
        %v725 = vadd.f32 %v720, %v723
        %726 = vst.msk [vmem:[%s188] sm:$0xff] %vm210, %v725
        %s727 = sand.u32 %s115, 1
        %s728 = scalar_lea.sflag [#allocation3], %s727
        %s729 = sand.u32 %s115, 1
        %s730 = smul.addr %s729, 8
        %s731 = scalar_lea.vmem [#allocation2], %s730
        // Predicated region
        $region37: #{tpu_custom_call.1} parent=35 // pred_check
          %p732 = pneg %p125
        $region38: #{tpu_custom_call.1} parent=35 // pred_check_branch
          %734 = sbr.rel (%p732) target = $region40
        $region39: #{tpu_custom_call.1} parent=35 // pred_region
          %736 = vsyncadd %s728, 0
          %s737 = smul.addr %s18, 8
          %s738 = scalar_lea.hbm %s4, %s737
          %s740 = sshll.u32 %s731, 4
          %s741 = int_to_ptr.vmem [resolvable:$true] %s740
          %s742 = sshll.u32 %s738, 4
          %s743 = int_to_ptr.hbm [resolvable:$true] %s742
          %745 = dma.vmem_to_hbm [thread:$0]  %s741, 128, %s743, %s728
        $region40: #{tpu_custom_call.1} parent=35 // pred_fallthru
          _
      $region36: #{tpu_custom_call.1} parent=5 // pred_fallthru
        _
      %p746 = scmp.le.s32.totalorder 2, %s13
      // Predicated region
      $region41: #{tpu_custom_call.1} parent=5 // pred_check
        %p747 = pneg %p746
      $region42: #{tpu_custom_call.1} parent=5 // pred_check_branch
        %749 = sbr.rel (%p747) target = $region44
      $region43: #{tpu_custom_call.1} parent=5 // pred_region
        %s750 = ssub.s32 %s13, 2
        // Predicated region
        $region45: #{tpu_custom_call.1} parent=43 // pred_check
          %p751 = pneg %p131
        $region46: #{tpu_custom_call.1} parent=43 // pred_check_branch
          %753 = sbr.rel (%p751) target = $region48
        $region47: #{tpu_custom_call.1} parent=43 // pred_region
          %s754 = sand.u32 %s116, 1
          %s755 = scalar_lea.sflag [#allocation3], %s754
          %s756 = sand.u32 %s116, 1
          %s757 = smul.addr %s756, 8
          %s758 = scalar_lea.vmem [#allocation2], %s757
          %760 = dma.done %s755, 128
        $region48: #{tpu_custom_call.1} parent=43 // pred_fallthru
          _
      $region44: #{tpu_custom_call.1} parent=5 // pred_fallthru
        _
    $region6: #{tpu_custom_call.1} parent=1 // loop_footer
      %s17 = sadd.s32 1, %s13
    $region7: #{tpu_custom_call.1} parent=1 // loop_footer_branch
      %12 = sbr.rel target = $region3
    $region8: #{tpu_custom_call.1} parent=1 // loop_exit
      _
    %761 = vsyncpa [#allocation3], 1
    %s762 = scalar_lea.sflag [#allocation3], 1
    %763 = vsyncpa %s762, 1

</llo_original>
